<compile_context>
chip_gen: v5e
topology: v5e:2x2
jax: 0.10.0
libtpu: 0.0.40
codegen_flags: <defaults>
</compile_context>

<pallas_src>
import functools

import jax
import jax.numpy as jnp
from jax.experimental import pallas as pl
from jax.experimental.pallas import tpu as pltpu

_TINY = 1e-13  # allennlp tiny_value_of_dtype(float32)


# ----------------------------------------------------------------------------
# Kernels
# ----------------------------------------------------------------------------
def _cross_match_kernel_full(q_ref, d_ref, m_ref, o_ref, *, matmul_dtype,
                             tanh_dtype):
    """Materialized (B,Q,S) mask path."""
    qf = q_ref[...].astype(jnp.float32)                      # (bt, tq, D)
    df = d_ref[...].astype(jnp.float32)                      # (bt, ts, D)

    # Row norms in f32, folded into the operand casts (norm scaling commutes
    # with the matmul) — no post-matmul (Q,S)-plane rescaling needed.
    inv_q = 1.0 / (jnp.sqrt(jnp.sum(qf * qf, axis=-1, keepdims=True)) + _TINY)
    inv_d = 1.0 / (jnp.sqrt(jnp.sum(df * df, axis=-1, keepdims=True)) + _TINY)
    q_mm = (qf * inv_q).astype(matmul_dtype)
    d_mm = (df * inv_d).astype(matmul_dtype)

    # MXU-native batched matmul: contract on the last dim, f32 accumulate.
    sim = jnp.einsum("bqd,bsd->bqs", q_mm, d_mm,
                     preferred_element_type=jnp.float32)     # (bt, tq, ts)

    scaled = sim * m_ref[...].astype(jnp.float32)
    o_ref[...] = jnp.tanh(scaled.astype(tanh_dtype)).astype(o_ref.dtype)


def _cross_match_kernel_sep(q_ref, d_ref, mq_ref, md_ref, o_ref, *,
                            matmul_dtype, tanh_dtype):
    """Separable mask path: mask = q_mask[:, :, None] * d_mask[:, None, :]."""
    qf = q_ref[...].astype(jnp.float32)                      # (bt, tq, D)
    df = d_ref[...].astype(jnp.float32)                      # (bt, ts, D)

    # Fold both the reciprocal norm and the 1-D mask into each operand.
    inv_q = mq_ref[...].astype(jnp.float32) / (
        jnp.sqrt(jnp.sum(qf * qf, axis=-1, keepdims=True)) + _TINY)
    inv_d = md_ref[...].astype(jnp.float32) / (
        jnp.sqrt(jnp.sum(df * df, axis=-1, keepdims=True)) + _TINY)
    q_mm = (qf * inv_q).astype(matmul_dtype)
    d_mm = (df * inv_d).astype(matmul_dtype)

    sim = jnp.einsum("bqd,bsd->bqs", q_mm, d_mm,
                     preferred_element_type=jnp.float32)     # (bt, tq, ts)
    o_ref[...] = jnp.tanh(sim.astype(tanh_dtype)).astype(o_ref.dtype)


# ----------------------------------------------------------------------------
# Tiling helpers
# ----------------------------------------------------------------------------
def _vmem_budget_and_limit():
    """Per-generation VMEM budget for tile picking + scoped-VMEM limit."""
    try:
        phys = int(pltpu.get_tpu_info().vmem_capacity_bytes)
    except Exception:
        phys = 64 << 20  # conservative (v7x per-TC size)
    budget = max(12 << 20, int(phys * 0.35))          # tile-pick footprint cap
    limit = int(min(phys // 2, budget + (32 << 20)))  # scoped-VMEM request
    return budget, limit


def _pick_batch_tile(B, per_b_bytes, budget_bytes):
    """Largest batch tile whose per-step footprint fits the budget.

    No 'must divide B' constraint (pl.cdiv handles a partial last block); a
    divisor is only preferred when it costs <= 25% of the achievable size.
    """
    cap = max(1, int(budget_bytes // max(per_b_bytes, 1)))
    cap = min(cap, B, 32)
    best_div = max(c for c in range(1, cap + 1) if B % c == 0)
    return best_div if best_div * 4 >= cap * 3 else cap


# ----------------------------------------------------------------------------
# Wrapper
# ----------------------------------------------------------------------------
def cross_match_layer(query_embeddings, document_embeddings, query_by_doc_mask,
                      *, matmul_dtype=jnp.bfloat16, out_dtype=None,
                      tanh_dtype=jnp.float32):
    """query_embeddings: (B, Q, D), document_embeddings: (B, S, D).

    query_by_doc_mask: either the materialized (B, Q, S) mask (original module
    signature) or a tuple (q_mask (B, Q), d_mask (B, S)) whose outer product is
    the mask. Returns (B, Q, S, 1).
    """
    B, Q, D = query_embeddings.shape
    Bd, S, Dd = document_embeddings.shape
    assert (Bd, Dd) == (B, D)

    matmul_dtype = jnp.dtype(matmul_dtype)
    if out_dtype is None:
        # bf16 output on the fast path (halves store traffic); f32 for parity.
        out_dtype = jnp.float32 if matmul_dtype == jnp.float32 else jnp.bfloat16
    out_dtype = jnp.dtype(out_dtype)

    separable = isinstance(query_by_doc_mask, (tuple, list))
    if separable:
        q_mask, d_mask = query_by_doc_mask
        assert q_mask.shape == (B, Q) and d_mask.shape == (B, S)
        q_mask = q_mask.reshape(B, Q, 1)   # lane-friendly trailing size-1 dim
        d_mask = d_mask.reshape(B, S, 1)
    else:
        assert query_by_doc_mask.shape == (B, Q, S)

    # (Q, S) tiling: full dims for small shapes, 512x512 tiles otherwise.
    tq = Q if Q <= 512 else 512
    ts = S if S <= 512 else 512
    gq = pl.cdiv(Q, tq)
    gs = pl.cdiv(S, ts)

    budget, vmem_limit = _vmem_budget_and_limit()
    mm_item = matmul_dtype.itemsize
    q_item = query_embeddings.dtype.itemsize
    d_item = document_embeddings.dtype.itemsize

    # Grid order: keep the operand whose re-reads would cost more HBM traffic
    # resident across the inner loop; the other streams.
    d_reread = (gq - 1) * S * D * d_item
    q_reread = (gs - 1) * Q * D * q_item
    stream_d = d_reread <= q_reread   # True: S-axis innermost, q resident

    # Pre-cast the *streamed* operand to the narrower matmul dtype in HBM only
    # when it is re-fetched >= 4x (the extra XLA convert pass then pays off).
    if mm_item < d_item and stream_d and gq >= 4:
        document_embeddings = document_embeddings.astype(matmul_dtype)
        d_item = mm_item
    if mm_item < q_item and (not stream_d) and gs >= 4:
        query_embeddings = query_embeddings.astype(matmul_dtype)
        q_item = mm_item

    if separable:
        mask_block_bytes = (tq * q_mask.dtype.itemsize
                            + ts * d_mask.dtype.itemsize)
    else:
        mask_block_bytes = tq * ts * query_by_doc_mask.dtype.itemsize

    # Per-batch footprint: double-buffered block buffers + f32 intermediates
    # (einsum result, mask cast / pre-tanh temp) + f32+cast copies of q/d.
    per_b = (2 * (tq * D * q_item + ts * D * d_item)
             + 2 * mask_block_bytes
             + 2 * tq * ts * out_dtype.itemsize
             + 3 * tq * ts * 4
             + (tq + ts) * D * (4 + mm_item))
    bt = _pick_batch_tile(B, per_b, budget)
    gb = pl.cdiv(B, bt)

    if stream_d:
        grid = (gb, gq, gs)
        q_spec = pl.BlockSpec((bt, tq, D), lambda b, i, j: (b, i, 0))
        d_spec = pl.BlockSpec((bt, ts, D), lambda b, i, j: (b, j, 0))
        o_spec = pl.BlockSpec((bt, tq, ts), lambda b, i, j: (b, i, j))
        mq_spec = pl.BlockSpec((bt, tq, 1), lambda b, i, j: (b, i, 0))
        md_spec = pl.BlockSpec((bt, ts, 1), lambda b, i, j: (b, j, 0))
        m_spec = pl.BlockSpec((bt, tq, ts), lambda b, i, j: (b, i, j))
    else:
        grid = (gb, gs, gq)
        q_spec = pl.BlockSpec((bt, tq, D), lambda b, j, i: (b, i, 0))
        d_spec = pl.BlockSpec((bt, ts, D), lambda b, j, i: (b, j, 0))
        o_spec = pl.BlockSpec((bt, tq, ts), lambda b, j, i: (b, i, j))
        mq_spec = pl.BlockSpec((bt, tq, 1), lambda b, j, i: (b, i, 0))
        md_spec = pl.BlockSpec((bt, ts, 1), lambda b, j, i: (b, j, 0))
        m_spec = pl.BlockSpec((bt, tq, ts), lambda b, j, i: (b, i, j))

    if separable:
        kernel = functools.partial(_cross_match_kernel_sep,
                                   matmul_dtype=matmul_dtype,
                                   tanh_dtype=tanh_dtype)
        in_specs = [q_spec, d_spec, mq_spec, md_spec]
        operands = (query_embeddings, document_embeddings, q_mask, d_mask)
    else:
        kernel = functools.partial(_cross_match_kernel_full,
                                   matmul_dtype=matmul_dtype,
                                   tanh_dtype=tanh_dtype)
        in_specs = [q_spec, d_spec, m_spec]
        operands = (query_embeddings, document_embeddings, query_by_doc_mask)

    out = pl.pallas_call(
        kernel,
        out_shape=jax.ShapeDtypeStruct((B, Q, S), out_dtype),
        grid_spec=pltpu.PrefetchScalarGridSpec(
            num_scalar_prefetch=0,
            grid=grid,
            in_specs=in_specs,
            out_specs=o_spec,
        ),
        compiler_params=pltpu.CompilerParams(
            # No reduction axes (D fully in-block) -> all parallel; megacore
            # (v7x) can shard any of the three axes.
            dimension_semantics=("parallel", "parallel", "parallel"),
            vmem_limit_bytes=vmem_limit,
        ),
    )(*operands)

    # torch's .unsqueeze(-1) — pure glue, kept outside the kernel on purpose.
    return out[..., None]


# ----------------------------------------------------------------------------
# Reference + tests
# ----------------------------------------------------------------------------
def _reference(q, d, m):
    qn = q / (jnp.linalg.norm(q, axis=-1, keepdims=True) + _TINY)
    dn = d / (jnp.linalg.norm(d, axis=-1, keepdims=True) + _TINY)
    sim = jnp.einsum("bqd,bsd->bqs", qn, dn)
    return jnp.tanh(sim * m)[..., None]


if __name__ == "__main__":
    key = jax.random.PRNGKey(0)
    kq, kd, km, kqm, kdm, kq2, kd2, km2 = jax.random.split(key, 8)

    # --- small shapes (single full-block grid step) -------------------------
    B, Q, S, D = 2, 8, 16, 32
    q = jax.random.normal(kq, (B, Q, D), dtype=jnp.float32)
    d = jax.random.normal(kd, (B, S, D), dtype=jnp.float32)
    mask_i8 = (jax.random.uniform(km, (B, Q, S)) > 0.3).astype(jnp.int8)
    mask_f32 = mask_i8.astype(jnp.float32)
    ref = _reference(q, d, mask_f32)

    # Fast path: bf16 MXU operands + bf16 output (tanh-bounded -> loose tol).
    out = cross_match_layer(q, d, mask_i8)
    jax.block_until_ready(out)
    assert out.shape == (B, Q, S, 1), out.shape
    assert jnp.allclose(out.astype(jnp.float32), ref, atol=2.5e-2, rtol=2.5e-2), \
        "bf16 path mismatch"

    # Exact path: f32 matmul operands, f32 output, tight tolerance.
    out_f32 = cross_match_layer(q, d, mask_i8, matmul_dtype=jnp.float32)
    jax.block_until_ready(out_f32)
    assert out_f32.dtype == jnp.float32
    assert jnp.allclose(out_f32, ref, atol=1e-5, rtol=1e-5), "f32 path mismatch"

    # --- separable-mask fast path (mask = outer product of 1-D masks) -------
    q_mask = (jax.random.uniform(kqm, (B, Q)) > 0.2).astype(jnp.int8)
    d_mask = (jax.random.uniform(kdm, (B, S)) > 0.2).astype(jnp.int8)
    full_mask = (q_mask[:, :, None] * d_mask[:, None, :]).astype(jnp.float32)
    ref_sep = _reference(q, d, full_mask)
    out_sep = cross_match_layer(q, d, (q_mask, d_mask))
    jax.block_until_ready(out_sep)
    assert out_sep.shape == (B, Q, S, 1)
    assert jnp.allclose(out_sep.astype(jnp.float32), ref_sep,
                        atol=2.5e-2, rtol=2.5e-2), "separable path mismatch"

    # --- non-divisible shapes: partial edge blocks along Q, S and batch -----
    B2, Q2, S2, D2 = 3, 520, 600, 48
    q2 = jax.random.normal(kq2, (B2, Q2, D2), dtype=jnp.float32)
    d2 = jax.random.normal(kd2, (B2, S2, D2), dtype=jnp.float32)
    m2 = (jax.random.uniform(km2, (B2, Q2, S2)) > 0.3).astype(jnp.int8)
    ref2 = _reference(q2, d2, m2.astype(jnp.float32))
    out2 = cross_match_layer(q2, d2, m2)
    jax.block_until_ready(out2)
    assert out2.shape == (B2, Q2, S2, 1)
    assert jnp.allclose(out2.astype(jnp.float32), ref2,
                        atol=2.5e-2, rtol=2.5e-2), "edge-block path mismatch"

    print("KERNEL_OK")
</pallas_src>

<mosaic_0001>
module attributes {stable_mosaic.version = 11 : i64} {
  func.func @_cross_match_kernel_full(%arg0: i32, %arg1: i32, %arg2: i32, %arg3: memref<2x8x32xf32, #tpu.memory_space<vmem>>, %arg4: memref<2x16x32xf32, #tpu.memory_space<vmem>>, %arg5: memref<2x8x16xi8, #tpu.memory_space<vmem>>, %arg6: memref<2x8x16xbf16, #tpu.memory_space<vmem>>) attributes {dimension_semantics = [#tpu.dimension_semantics<parallel>, #tpu.dimension_semantics<parallel>, #tpu.dimension_semantics<parallel>], iteration_bounds = array<i64: 1, 1, 1>, scalar_prefetch = 0 : i64, scratch_operands = 0 : i64, tpu.core_type = #tpu.core_type<tc>, window_params = [{transform_indices = @transform_0, window_bounds = array<i64: 2, 8, 32>}, {transform_indices = @transform_1, window_bounds = array<i64: 2, 16, 32>}, {transform_indices = @transform_2, window_bounds = array<i64: 2, 8, 16>}, {transform_indices = @transform_3, window_bounds = array<i64: 2, 8, 16>}]} {
    %c0 = arith.constant 0 : index
    %c0_0 = arith.constant 0 : index
    %c0_1 = arith.constant 0 : index
    %0 = vector.load %arg3[%c0, %c0_0, %c0_1] : memref<2x8x32xf32, #tpu.memory_space<vmem>>, vector<2x8x32xf32>
    %c0_2 = arith.constant 0 : index
    %c0_3 = arith.constant 0 : index
    %c0_4 = arith.constant 0 : index
    %1 = vector.load %arg4[%c0_2, %c0_3, %c0_4] : memref<2x16x32xf32, #tpu.memory_space<vmem>>, vector<2x16x32xf32>
    %2 = arith.mulf %0, %0 : vector<2x8x32xf32>
    %cst = arith.constant dense<0.000000e+00> : vector<2x8xf32>
    %3 = vector.multi_reduction <add>, %2, %cst [2] : vector<2x8x32xf32> to vector<2x8xf32>
    %4 = vector.shape_cast %3 : vector<2x8xf32> to vector<2x8x1xf32>
    %5 = math.sqrt %4 : vector<2x8x1xf32>
    %cst_5 = arith.constant 9.99999982E-14 : f32
    %6 = vector.broadcast %cst_5 : f32 to vector<2x8x1xf32>
    %7 = arith.addf %5, %6 : vector<2x8x1xf32>
    %cst_6 = arith.constant 1.000000e+00 : f32
    %8 = vector.broadcast %cst_6 : f32 to vector<2x8x1xf32>
    %9 = arith.divf %8, %7 : vector<2x8x1xf32>
    %10 = arith.mulf %1, %1 : vector<2x16x32xf32>
    %cst_7 = arith.constant dense<0.000000e+00> : vector<2x16xf32>
    %11 = vector.multi_reduction <add>, %10, %cst_7 [2] : vector<2x16x32xf32> to vector<2x16xf32>
    %12 = vector.shape_cast %11 : vector<2x16xf32> to vector<2x16x1xf32>
    %13 = math.sqrt %12 : vector<2x16x1xf32>
    %cst_8 = arith.constant 9.99999982E-14 : f32
    %14 = vector.broadcast %cst_8 : f32 to vector<2x16x1xf32>
    %15 = arith.addf %13, %14 : vector<2x16x1xf32>
    %cst_9 = arith.constant 1.000000e+00 : f32
    %16 = vector.broadcast %cst_9 : f32 to vector<2x16x1xf32>
    %17 = arith.divf %16, %15 : vector<2x16x1xf32>
    %18 = vector.broadcast %9 : vector<2x8x1xf32> to vector<2x8x32xf32>
    %19 = arith.mulf %0, %18 : vector<2x8x32xf32>
    %20 = arith.truncf %19 : vector<2x8x32xf32> to vector<2x8x32xbf16>
    %21 = vector.broadcast %17 : vector<2x16x1xf32> to vector<2x16x32xf32>
    %22 = arith.mulf %1, %21 : vector<2x16x32xf32>
    %23 = arith.truncf %22 : vector<2x16x32xf32> to vector<2x16x32xbf16>
    "tpu.trace_start"() <{level = 10 : i32, message = "bqd,bsd->bqs"}> : () -> ()
    %cst_10 = arith.constant dense<0.000000e+00> : vector<2x8x16xf32>
    %24 = tpu.matmul %20, %23, %cst_10 {dimension_numbers = #tpu.dot_dimension_numbers<[2], [2], [1], [1], [0, 0, 0, 1, 1, 1], [0], [0]>} : vector<2x8x32xbf16>, vector<2x16x32xbf16>, vector<2x8x16xf32> -> vector<2x8x16xf32>
    "tpu.trace_stop"() : () -> ()
    %c0_11 = arith.constant 0 : index
    %c0_12 = arith.constant 0 : index
    %c0_13 = arith.constant 0 : index
    %25 = vector.load %arg5[%c0_11, %c0_12, %c0_13] : memref<2x8x16xi8, #tpu.memory_space<vmem>>, vector<2x8x16xi8>
    %26 = arith.sitofp %25 : vector<2x8x16xi8> to vector<2x8x16xf32>
    %27 = arith.mulf %24, %26 : vector<2x8x16xf32>
    %28 = math.tanh %27 : vector<2x8x16xf32>
    %29 = arith.truncf %28 : vector<2x8x16xf32> to vector<2x8x16xbf16>
    %c0_14 = arith.constant 0 : index
    %c0_15 = arith.constant 0 : index
    %c0_16 = arith.constant 0 : index
    %30 = vector.load %arg6[%c0_14, %c0_15, %c0_16] : memref<2x8x16xbf16, #tpu.memory_space<vmem>>, vector<2x8x16xbf16>
    tpu.vector_store %arg6[%c0_14, %c0_15, %c0_16], %29 {strides = array<i32>} : memref<2x8x16xbf16, #tpu.memory_space<vmem>>, vector<2x8x16xbf16>,
    return
  }
  func.func @transform_0(%arg0: i32, %arg1: i32, %arg2: i32) -> (i32, i32, i32) {
    %c0_i32 = arith.constant 0 : i32
    %c0_i32_0 = arith.constant 0 : i32
    return %arg0, %arg1, %c0_i32 : i32, i32, i32
  }
  func.func @transform_1(%arg0: i32, %arg1: i32, %arg2: i32) -> (i32, i32, i32) {
    %c0_i32 = arith.constant 0 : i32
    %c0_i32_0 = arith.constant 0 : i32
    return %arg0, %arg2, %c0_i32 : i32, i32, i32
  }
  func.func @transform_2(%arg0: i32, %arg1: i32, %arg2: i32) -> (i32, i32, i32) {
    %c0_i32 = arith.constant 0 : i32
    return %arg0, %arg1, %arg2 : i32, i32, i32
  }
  func.func @transform_3(%arg0: i32, %arg1: i32, %arg2: i32) -> (i32, i32, i32) {
    %c0_i32 = arith.constant 0 : i32
    return %arg0, %arg1, %arg2 : i32, i32, i32
  }
}

</mosaic_0001>

<llo_original>
// kernel: tpu_custom_call.1
$region0: #{tpu_custom_call.1}
  #allocation0 [shape = 'u32[]', space=smem, size = 0x4, offset = 0x4, fixed_abs, tag = 'smem constant byte address 0x4 - core index']
  #allocation1 [shape = 'u32[72,128]{1,0:T(1,128)}', space=vmem, size = 0x9000, scoped, tag = 'internal scratch']
  %s0 = inlined_call_operand.hbm [shape: f32[2,8,32], index: 0, kind: input, shape index: {}]
  %s1 = inlined_call_operand.hbm [shape: f32[2,16,32], index: 1, kind: input, shape index: {}]
  %s2 = inlined_call_operand.hbm [shape: s8[2,8,16], index: 2, kind: input, shape index: {}]
  %s3 = inlined_call_operand.hbm [shape: bf16[2,8,16], index: 3, kind: output, shape index: {}]
  %s4 = sld [smem:[#allocation0]]
  $region34: #{tpu_custom_call.1} parent=0
    _
  %s6 = ssub.s32 1, %s4
  %s7 = scalar_select 0, %s6, %s4
  $region1: #{tpu_custom_call.1} parent=0
    #allocation2 [shape = 'u8[8192]{0}', space=vmem, size = 0x2000, scoped, tag = 'input window, operand 0, single buffered']
    #allocation3 [shape = 's32[1]{0}', space=sflag, size = 0x4, scoped, tag = 'scoped memory for tpu_custom_call.1']
    #allocation4 [shape = 's32[1]{0}', space=sflag, size = 0x4, scoped, tag = 'scoped memory for tpu_custom_call.1']
    #allocation5 [shape = 'u8[16384]{0}', space=vmem, size = 0x4000, scoped, tag = 'input window, operand 1, single buffered']
    #allocation6 [shape = 's32[1]{0}', space=sflag, size = 0x4, scoped, tag = 'scoped memory for tpu_custom_call.1']
    #allocation7 [shape = 'u8[2048]{0}', space=vmem, size = 0x800, scoped, tag = 'input window, operand 2, single buffered']
    #allocation8 [shape = 'u8[4096]{0}', space=vmem, size = 0x1000, scoped, tag = 'output window, operand 0, single buffered']
    %8 = vsyncpa [#allocation3], 0
    %9 = vsyncpa [#allocation6], 0
    %10 = vsyncpa [#allocation4], 0
    // Predicated region
    $region2: #{tpu_custom_call.1} parent=1 // pred_check
      _
    $region3: #{tpu_custom_call.1} parent=1 // pred_check_branch
      %12 = sbr.rel (0) target = $region5
    $region4: #{tpu_custom_call.1} parent=1 // pred_region
      %14 = vsyncadd [#allocation3], 0
      %s15 = sshll.u32 %s0, 4
      %s16 = int_to_ptr.hbm [resolvable:$true] %s15
      %s17 = sshll.u32 [#allocation2], 4
      %s18 = int_to_ptr.vmem [resolvable:$true] %s17
      %23 = dma.hbm_to_vmem [thread:$0]  %s16, 256, %s18, [#allocation3], 128, 128, 8
    $region5: #{tpu_custom_call.1} parent=1 // pred_fallthru
      _
    // Predicated region
    $region6: #{tpu_custom_call.1} parent=1 // pred_check
      _
    $region7: #{tpu_custom_call.1} parent=1 // pred_check_branch
      %25 = sbr.rel (0) target = $region9
    $region8: #{tpu_custom_call.1} parent=1 // pred_region
      %27 = vsyncadd [#allocation6], 0
      %s28 = sshll.u32 %s1, 4
      %s29 = int_to_ptr.hbm [resolvable:$true] %s28
      %s30 = sshll.u32 [#allocation5], 4
      %s31 = int_to_ptr.vmem [resolvable:$true] %s30
      %36 = dma.hbm_to_vmem [thread:$0]  %s29, 512, %s31, [#allocation6], 128, 128, 8
    $region9: #{tpu_custom_call.1} parent=1 // pred_fallthru
      _
    // Predicated region
    $region10: #{tpu_custom_call.1} parent=1 // pred_check
      _
    $region11: #{tpu_custom_call.1} parent=1 // pred_check_branch
      %38 = sbr.rel (0) target = $region13
    $region12: #{tpu_custom_call.1} parent=1 // pred_region
      %40 = vsyncadd [#allocation6], 0
      %s41 = sshll.u32 %s2, 4
      %s42 = int_to_ptr.hbm [resolvable:$true] %s41
      %s43 = sshll.u32 [#allocation7], 4
      %s44 = int_to_ptr.vmem [resolvable:$true] %s43
      %49 = dma.hbm_to_vmem [thread:$0]  %s42, 64, %s44, [#allocation6], 32, 32, 2
    $region13: #{tpu_custom_call.1} parent=1 // pred_fallthru
      _
    // Predicated region
    $region14: #{tpu_custom_call.1} parent=1 // pred_check
      _
    $region15: #{tpu_custom_call.1} parent=1 // pred_check_branch
      %51 = sbr.rel (0) target = $region17
    $region16: #{tpu_custom_call.1} parent=1 // pred_region
      %53 = dma.done [#allocation3], 256
    $region17: #{tpu_custom_call.1} parent=1 // pred_fallthru
      _
    // Predicated region
    $region18: #{tpu_custom_call.1} parent=1 // pred_check
      _
    $region19: #{tpu_custom_call.1} parent=1 // pred_check_branch
      %55 = sbr.rel (0) target = $region21
    $region20: #{tpu_custom_call.1} parent=1 // pred_region
      %57 = dma.done [#allocation6], 512
    $region21: #{tpu_custom_call.1} parent=1 // pred_fallthru
      _
    // Predicated region
    $region22: #{tpu_custom_call.1} parent=1 // pred_check
      _
    $region23: #{tpu_custom_call.1} parent=1 // pred_check_branch
      %59 = sbr.rel (0) target = $region25
    $region24: #{tpu_custom_call.1} parent=1 // pred_region
      %61 = dma.done [#allocation6], 64
    $region25: #{tpu_custom_call.1} parent=1 // pred_fallthru
      _
    %v63 = vld [vmem:[#allocation2] sm:$0xff]
    %v64 = vld [vmem:[#allocation2 + $0x8] sm:$0xff]
    %v65 = vld [vmem:[#allocation5] sm:$0xff]
    %v66 = vld [vmem:[#allocation5 + $0x8] sm:$0xff]
    %v67 = vld [vmem:[#allocation5 + $0x10] sm:$0xff]
    %v68 = vld [vmem:[#allocation5 + $0x18] sm:$0xff]
    %v69 = vmul.f32 %v63, %v63
    %v70 = vmul.f32 %v64, %v64
    %vm71 = vcmask 261120
    %v72 = vsel %vm71, %v69, 0.0
    %73 = vadd.xlane.f32.xlu0 %v72
    %v74 = vpop.xlane.xlu0 %73
    %v75 = vsel %vm71, %v70, 0.0
    %76 = vadd.xlane.f32.xlu0 %v75
    %v77 = vpop.xlane.xlu0 %76
    %v78 = vrsqrt.pop %v74
    %v79 = vmul.f32 %v78, %v74
    %v80 = vmul.f32 %v79, %v78
    %v81 = vmul.f32 0.5, %v80
    %v82 = vsub.f32 1.5, %v81
    %v83 = vmul.f32 %v78, %v82
    %v84 = vmul.f32 %v74, %v83
    %vm85 = vcmp.eq.f32.partialorder %v74, inf
    %v86 = vsel %vm85, %v74, %v84
    %vm87 = vcmp.eq.f32.partialorder %v74, 0.0
    %v88 = vand.u32 %v74, 2147483648
    %v89 = vsel %vm87, %v88, %v86
    %v90 = vrsqrt.pop %v77
    %v91 = vmul.f32 %v90, %v77
    %v92 = vmul.f32 %v91, %v90
    %v93 = vmul.f32 0.5, %v92
    %v94 = vsub.f32 1.5, %v93
    %v95 = vmul.f32 %v90, %v94
    %v96 = vmul.f32 %v77, %v95
    %vm97 = vcmp.eq.f32.partialorder %v77, inf
    %v98 = vsel %vm97, %v77, %v96
    %vm99 = vcmp.eq.f32.partialorder %v77, 0.0
    %v100 = vand.u32 %v77, 2147483648
    %v101 = vsel %vm99, %v100, %v98
    %v102 = vadd.f32 %v89, 1e-13
    %v103 = vadd.f32 %v101, 1e-13
    %v104 = vrcp.pop %v102
    %v105 = vmul.f32 %v102, %v104
    %v106 = vsub.f32 1.0, %v105
    %v107 = vmul.f32 %v104, %v106
    %v108 = vadd.f32 %v104, %v107
    %vm109 = vweird.f32 %v102
    %vm110 = vweird.f32 %v104
    %vm111 = vmor %vm109, %vm110
    %v112 = vsel %vm111, %v104, %v108
    %v113 = vand.u32 2147483647, %v102
    %vm114 = vcmp.eq.f32.partialorder %v113, 8.507059e+37
    %v115 = vand.u32 %v102, 2147483648
    %v116 = vor.u32 1.1754944e-38, %v115
    %v117 = vsel %vm114, %v116, %v112
    %v118 = vmul.f32 1.0, %v117
    %v119 = vrcp.pop %v103
    %v120 = vmul.f32 %v103, %v119
    %v121 = vsub.f32 1.0, %v120
    %v122 = vmul.f32 %v119, %v121
    %v123 = vadd.f32 %v119, %v122
    %vm124 = vweird.f32 %v103
    %vm125 = vweird.f32 %v119
    %vm126 = vmor %vm124, %vm125
    %v127 = vsel %vm126, %v119, %v123
    %v128 = vand.u32 2147483647, %v103
    %vm129 = vcmp.eq.f32.partialorder %v128, 8.507059e+37
    %v130 = vand.u32 %v103, 2147483648
    %v131 = vor.u32 1.1754944e-38, %v130
    %v132 = vsel %vm129, %v131, %v127
    %v133 = vmul.f32 1.0, %v132
    %v134 = vmul.f32 %v65, %v65
    %v135 = vmul.f32 %v66, %v66
    %v136 = vmul.f32 %v67, %v67
    %v137 = vmul.f32 %v68, %v68
    %v138 = vsel %vm71, %v134, 0.0
    %139 = vadd.xlane.f32.xlu0 %v138
    %v140 = vpop.xlane.xlu0 %139
    %v141 = vsel %vm71, %v135, 0.0
    %142 = vadd.xlane.f32.xlu0 %v141
    %v143 = vpop.xlane.xlu0 %142
    %v144 = vsel %vm71, %v136, 0.0
    %145 = vadd.xlane.f32.xlu0 %v144
    %v146 = vpop.xlane.xlu0 %145
    %v147 = vsel %vm71, %v137, 0.0
    %148 = vadd.xlane.f32.xlu0 %v147
    %v149 = vpop.xlane.xlu0 %148
    %v150 = vrsqrt.pop %v140
    %v151 = vmul.f32 %v150, %v140
    %v152 = vmul.f32 %v151, %v150
    %v153 = vmul.f32 0.5, %v152
    %v154 = vsub.f32 1.5, %v153
    %v155 = vmul.f32 %v150, %v154
    %v156 = vmul.f32 %v140, %v155
    %vm157 = vcmp.eq.f32.partialorder %v140, inf
    %v158 = vsel %vm157, %v140, %v156
    %vm159 = vcmp.eq.f32.partialorder %v140, 0.0
    %v160 = vand.u32 %v140, 2147483648
    %v161 = vsel %vm159, %v160, %v158
    %v162 = vrsqrt.pop %v143
    %v163 = vmul.f32 %v162, %v143
    %v164 = vmul.f32 %v163, %v162
    %v165 = vmul.f32 0.5, %v164
    %v166 = vsub.f32 1.5, %v165
    %v167 = vmul.f32 %v162, %v166
    %v168 = vmul.f32 %v143, %v167
    %vm169 = vcmp.eq.f32.partialorder %v143, inf
    %v170 = vsel %vm169, %v143, %v168
    %vm171 = vcmp.eq.f32.partialorder %v143, 0.0
    %v172 = vand.u32 %v143, 2147483648
    %v173 = vsel %vm171, %v172, %v170
    %v174 = vrsqrt.pop %v146
    %v175 = vmul.f32 %v174, %v146
    %v176 = vmul.f32 %v175, %v174
    %v177 = vmul.f32 0.5, %v176
    %v178 = vsub.f32 1.5, %v177
    %v179 = vmul.f32 %v174, %v178
    %v180 = vmul.f32 %v146, %v179
    %vm181 = vcmp.eq.f32.partialorder %v146, inf
    %v182 = vsel %vm181, %v146, %v180
    %vm183 = vcmp.eq.f32.partialorder %v146, 0.0
    %v184 = vand.u32 %v146, 2147483648
    %v185 = vsel %vm183, %v184, %v182
    %v186 = vrsqrt.pop %v149
    %v187 = vmul.f32 %v186, %v149
    %v188 = vmul.f32 %v187, %v186
    %v189 = vmul.f32 0.5, %v188
    %v190 = vsub.f32 1.5, %v189
    %v191 = vmul.f32 %v186, %v190
    %v192 = vmul.f32 %v149, %v191
    %vm193 = vcmp.eq.f32.partialorder %v149, inf
    %v194 = vsel %vm193, %v149, %v192
    %vm195 = vcmp.eq.f32.partialorder %v149, 0.0
    %v196 = vand.u32 %v149, 2147483648
    %v197 = vsel %vm195, %v196, %v194
    %v198 = vadd.f32 %v161, 1e-13
    %v199 = vadd.f32 %v173, 1e-13
    %v200 = vadd.f32 %v185, 1e-13
    %v201 = vadd.f32 %v197, 1e-13
    %v202 = vrcp.pop %v198
    %v203 = vmul.f32 %v198, %v202
    %v204 = vsub.f32 1.0, %v203
    %v205 = vmul.f32 %v202, %v204
    %v206 = vadd.f32 %v202, %v205
    %vm207 = vweird.f32 %v198
    %vm208 = vweird.f32 %v202
    %vm209 = vmor %vm207, %vm208
    %v210 = vsel %vm209, %v202, %v206
    %v211 = vand.u32 2147483647, %v198
    %vm212 = vcmp.eq.f32.partialorder %v211, 8.507059e+37
    %v213 = vand.u32 %v198, 2147483648
    %v214 = vor.u32 1.1754944e-38, %v213
    %v215 = vsel %vm212, %v214, %v210
    %v216 = vmul.f32 1.0, %v215
    %v217 = vrcp.pop %v199
    %v218 = vmul.f32 %v199, %v217
    %v219 = vsub.f32 1.0, %v218
    %v220 = vmul.f32 %v217, %v219
    %v221 = vadd.f32 %v217, %v220
    %vm222 = vweird.f32 %v199
    %vm223 = vweird.f32 %v217
    %vm224 = vmor %vm222, %vm223
    %v225 = vsel %vm224, %v217, %v221
    %v226 = vand.u32 2147483647, %v199
    %vm227 = vcmp.eq.f32.partialorder %v226, 8.507059e+37
    %v228 = vand.u32 %v199, 2147483648
    %v229 = vor.u32 1.1754944e-38, %v228
    %v230 = vsel %vm227, %v229, %v225
    %v231 = vmul.f32 1.0, %v230
    %v232 = vrcp.pop %v200
    %v233 = vmul.f32 %v200, %v232
    %v234 = vsub.f32 1.0, %v233
    %v235 = vmul.f32 %v232, %v234
    %v236 = vadd.f32 %v232, %v235
    %vm237 = vweird.f32 %v200
    %vm238 = vweird.f32 %v232
    %vm239 = vmor %vm237, %vm238
    %v240 = vsel %vm239, %v232, %v236
    %v241 = vand.u32 2147483647, %v200
    %vm242 = vcmp.eq.f32.partialorder %v241, 8.507059e+37
    %v243 = vand.u32 %v200, 2147483648
    %v244 = vor.u32 1.1754944e-38, %v243
    %v245 = vsel %vm242, %v244, %v240
    %v246 = vmul.f32 1.0, %v245
    %v247 = vrcp.pop %v201
    %v248 = vmul.f32 %v201, %v247
    %v249 = vsub.f32 1.0, %v248
    %v250 = vmul.f32 %v247, %v249
    %v251 = vadd.f32 %v247, %v250
    %vm252 = vweird.f32 %v201
    %vm253 = vweird.f32 %v247
    %vm254 = vmor %vm252, %vm253
    %v255 = vsel %vm254, %v247, %v251
    %v256 = vand.u32 2147483647, %v201
    %vm257 = vcmp.eq.f32.partialorder %v256, 8.507059e+37
    %v258 = vand.u32 %v201, 2147483648
    %v259 = vor.u32 1.1754944e-38, %v258
    %v260 = vsel %vm257, %v259, %v255
    %v261 = vmul.f32 1.0, %v260
    %v262 = vmul.f32 %v63, %v118
    %v263 = vmul.f32 %v64, %v133
    %v264 = vpack.c.bf16 %v262, %v262
    %v265 = vpack.c.bf16 %v263, %v263
    %v266 = vmul.f32 %v65, %v216
    %v267 = vmul.f32 %v66, %v231
    %v268 = vmul.f32 %v67, %v246
    %v269 = vmul.f32 %v68, %v261
    %v270 = vpack.c.bf16 %v266, %v266
    %v271 = vpack.c.bf16 %v267, %v267
    %v272 = vpack.c.bf16 %v268, %v268
    %v273 = vpack.c.bf16 %v269, %v269
    %v276 = vunpack.c.l.b16 %v270
    %v277 = vunpack.c.l.b16 %v271
    %v278 = vpack.c.b16 %v277, %v276
    %v280 = vsel %vm71, %v264, 0
    %v283 = vsel %vm71, %v278, 0
    %285 = vmatpush.bf16.xpose.msra.mxu0 0
    %286 = vmatpush.bf16.xpose.msra.mxu0 0
    %287 = vmatpush.bf16.xpose.msra.mxu0 0
    %288 = vmatpush.bf16.xpose.msra.mxu0 0
    %289 = vmatpush.bf16.xpose.msra.mxu0 0
    %290 = vmatpush.bf16.xpose.msra.mxu0 0
    %291 = vmatpush.bf16.xpose.msra.mxu0 0
    %292 = vmatpush.bf16.xpose.msra.mxu0 %v283
    %293 = vmatmul.bf16.gmra.mxu0 %v280
    %v294 = vpop.f32.mrf.mxu0
    %v295 = vadd.f32 0.0, %v294
    %v296 = vpop.f32.mrf.mxu0
    %297 = vdwg.mxu0
    %v300 = vunpack.c.l.b16 %v272
    %v301 = vunpack.c.l.b16 %v273
    %v302 = vpack.c.b16 %v301, %v300
    %v304 = vsel %vm71, %v265, 0
    %v307 = vsel %vm71, %v302, 0
    %309 = vmatpush.bf16.xpose.msra.mxu0 0
    %310 = vmatpush.bf16.xpose.msra.mxu0 0
    %311 = vmatpush.bf16.xpose.msra.mxu0 0
    %312 = vmatpush.bf16.xpose.msra.mxu0 0
    %313 = vmatpush.bf16.xpose.msra.mxu0 0
    %314 = vmatpush.bf16.xpose.msra.mxu0 0
    %315 = vmatpush.bf16.xpose.msra.mxu0 0
    %316 = vmatpush.bf16.xpose.msra.mxu0 %v307
    %317 = vmatmul.bf16.gmra.mxu0 %v304
    %v318 = vpop.f32.mrf.mxu0
    %v319 = vadd.f32 0.0, %v318
    %v320 = vpop.f32.mrf.mxu0
    %321 = vdwg.mxu0
    %v322 = vld [vmem:[#allocation7] sm:$0x3]
    %v323 = vld [vmem:[#allocation7 + $0x2] sm:$0x3]
    %v324 = vunpack.c.0.s8 %v322
    %v325 = vunpack.c.0.s8 %v323
    %v326 = vcvt.s32.f32 %v324
    %v327 = vcvt.s32.f32 %v325
    %v328 = vmul.f32 %v295, %v326
    %v329 = vmul.f32 %v319, %v327
    %v330 = vtanh.pop %v328
    %v331 = vtanh.pop %v329
    %v332 = vpack.c.bf16 %v330, %v330
    %v333 = vpack.c.bf16 %v331, %v331
    %vm334 = vcmask 125952
    %335 = vst.msk [vmem:[#allocation8] sm:$0xf] %vm334, %v332
    %336 = vst.msk [vmem:[#allocation8 + $0x4] sm:$0xf] %vm334, %v333
    // Predicated region
    $region26: #{tpu_custom_call.1} parent=1 // pred_check
      _
    $region27: #{tpu_custom_call.1} parent=1 // pred_check_branch
      %338 = sbr.rel (0) target = $region29
    $region28: #{tpu_custom_call.1} parent=1 // pred_region
      %340 = vsyncadd [#allocation4], 0
      %s341 = sshll.u32 [#allocation8], 4
      %s342 = int_to_ptr.vmem [resolvable:$true] %s341
      %s343 = sshll.u32 %s3, 4
      %s344 = int_to_ptr.hbm [resolvable:$true] %s343
      %349 = dma.vmem_to_hbm [thread:$0]  %s342, 128, %s344, [#allocation4], 64, 64, 4
    $region29: #{tpu_custom_call.1} parent=1 // pred_fallthru
      _
    // Predicated region
    $region30: #{tpu_custom_call.1} parent=1 // pred_check
      _
    $region31: #{tpu_custom_call.1} parent=1 // pred_check_branch
      %351 = sbr.rel (0) target = $region33
    $region32: #{tpu_custom_call.1} parent=1 // pred_region
      %353 = dma.done [#allocation4], 128
    $region33: #{tpu_custom_call.1} parent=1 // pred_fallthru
      _
    %354 = vsyncpa [#allocation3], 1
    %355 = vsyncpa [#allocation6], 1
    %356 = vsyncpa [#allocation4], 1

</llo_original>
